<compile_context>
chip_gen: v7x
topology: tpu7x:2x2x1
jax: 0.10.0
libtpu: 0.0.40
codegen_flags: <defaults>
</compile_context>

<pallas_src>
import jax
import jax.numpy as jnp
from jax.experimental import pallas as pl
from jax.experimental.pallas import tpu as pltpu


def _embed_add_kernel(idx_ref, lettre_ref, pos_ref, o_ref):
    # idx_ref:    (L, 1) int32 in VMEM (token ids, pre-clamped to [0, V))
    # lettre_ref: (V, D) float32 in VMEM (letter embedding table)
    # pos_ref:    (V, D) float32 in VMEM (position embedding table)
    # o_ref:      (L, D) float32 output in VMEM
    L, D = o_ref.shape
    V = lettre_ref.shape[0]

    idx = idx_ref[...]                                          # (L, 1) int32
    col = jax.lax.broadcasted_iota(jnp.int32, (L, V), 1)        # (L, V)
    one_hot = (col == idx).astype(jnp.float32)                  # (L, V) one-hot rows

    # Gather via MXU: one-hot [L,V] @ table [V,D] -> [L,D] (exact: one 1.0/row).
    gathered = jnp.dot(one_hot, lettre_ref[...],
                       preferred_element_type=jnp.float32)

    # Position rows 0..L-1 are a contiguous static slice of the table.
    o_ref[...] = gathered + pos_ref[0:L, :]


def embedding_forward(x_idx, embed_lettre, embed_position):
    """x_idx: int[L]; embed_*: float32[V, D]. Returns float32[L, D]."""
    L = x_idx.shape[0]
    V, D = embed_lettre.shape
    if L > V:
        # Same implicit constraint as the PyTorch module (position id < V).
        raise ValueError(f"sequence length L={L} must be <= vocab size V={V}")

    # Clamp token ids so a bad id can't drive an out-of-range read.
    idx = jnp.clip(x_idx.astype(jnp.int32), 0, V - 1).reshape(L, 1)

    return pl.pallas_call(
        _embed_add_kernel,
        out_shape=jax.ShapeDtypeStruct((L, D), jnp.float32),
        in_specs=[
            pl.BlockSpec(memory_space=pltpu.MemorySpace.VMEM),  # idx (L,1)
            pl.BlockSpec(memory_space=pltpu.MemorySpace.VMEM),  # letter table
            pl.BlockSpec(memory_space=pltpu.MemorySpace.VMEM),  # position table
        ],
        out_specs=pl.BlockSpec(memory_space=pltpu.MemorySpace.VMEM),
    )(idx, embed_lettre, embed_position)


if __name__ == "__main__":
    V = 16   # len(dico)
    D = 64   # embedding dim (from the module)
    L = 8    # sequence length; must be <= V (same constraint as the PyTorch code)

    key = jax.random.PRNGKey(0)
    k_lettre, k_pos, k_x = jax.random.split(key, 3)

    # nn.Embedding default init ~ N(0, 1)
    embed_lettre = jax.random.normal(k_lettre, (V, D), dtype=jnp.float32)
    embed_position = jax.random.normal(k_pos, (V, D), dtype=jnp.float32)

    x = jax.random.randint(k_x, (L,), 0, V, dtype=jnp.int32)

    out = embedding_forward(x, embed_lettre, embed_position)
    out = jax.block_until_ready(out)

    # Pure-JAX reference check
    ref = jnp.take(embed_lettre, x, axis=0) + jnp.take(
        embed_position, jnp.arange(L), axis=0
    )
    assert out.shape == (L, D)
    assert jnp.allclose(out, ref, atol=1e-6), "mismatch vs reference"

    print("KERNEL_OK")
</pallas_src>

<mosaic_0001>
module attributes {stable_mosaic.version = 11 : i64} {
  func.func @_embed_add_kernel(%arg0: memref<8x1xi32, #tpu.memory_space<vmem>>, %arg1: memref<16x64xf32, #tpu.memory_space<vmem>>, %arg2: memref<16x64xf32, #tpu.memory_space<vmem>>, %arg3: memref<8x64xf32, #tpu.memory_space<vmem>>) attributes {dimension_semantics = [], scalar_prefetch = 0 : i64, scratch_operands = 0 : i64, tpu.core_type = #tpu.core_type<tc>} {
    %c0 = arith.constant 0 : index
    %c0_0 = arith.constant 0 : index
    %0 = vector.load %arg0[%c0, %c0_0] : memref<8x1xi32, #tpu.memory_space<vmem>>, vector<8x1xi32>
    %1 = tpu.iota {dimensions = array<i32: 1>} : vector<8x16xi32>
    %2 = vector.broadcast %0 : vector<8x1xi32> to vector<8x16xi32>
    %3 = arith.cmpi eq, %1, %2 : vector<8x16xi32>
    %4 = arith.extui %3 : vector<8x16xi1> to vector<8x16xi32>
    %5 = arith.sitofp %4 : vector<8x16xi32> to vector<8x16xf32>
    %c0_1 = arith.constant 0 : index
    %c0_2 = arith.constant 0 : index
    %6 = vector.load %arg1[%c0_1, %c0_2] : memref<16x64xf32, #tpu.memory_space<vmem>>, vector<16x64xf32>
    %cst = arith.constant dense<0.000000e+00> : vector<8x64xf32>
    %7 = tpu.matmul %5, %6, %cst {dimension_numbers = #tpu.dot_dimension_numbers<[1], [0], [0], [1], [0, 0, 1, 1], [], []>} : vector<8x16xf32>, vector<16x64xf32>, vector<8x64xf32> -> vector<8x64xf32>
    %c0_3 = arith.constant 0 : index
    %c0_4 = arith.constant 0 : index
    %8 = vector.load %arg2[%c0_3, %c0_4] : memref<16x64xf32, #tpu.memory_space<vmem>>, vector<8x64xf32>
    %9 = arith.addf %7, %8 : vector<8x64xf32>
    %c0_5 = arith.constant 0 : index
    %c0_6 = arith.constant 0 : index
    %10 = vector.load %arg3[%c0_5, %c0_6] : memref<8x64xf32, #tpu.memory_space<vmem>>, vector<8x64xf32>
    tpu.vector_store %arg3[%c0_5, %c0_6], %9 {strides = array<i32>} : memref<8x64xf32, #tpu.memory_space<vmem>>, vector<8x64xf32>,
    return
  }
}

</mosaic_0001>

<llo_original>
// kernel: tpu_custom_call.1
$region0: #{tpu_custom_call.1}
  #allocation0 [shape = 'u32[]', space=smem, size = 0x4, offset = 0x4, fixed_abs, tag = 'smem constant byte address 0x4 - core index']
  #allocation1 [shape = 'u32[144,128]{1,0:T(1,128)}', space=vmem, size = 0x12000, scoped, tag = 'internal scratch']
  %s0 = inlined_call_operand.vmem [shape: s32[8,1], index: 0, kind: input, shape index: {}]
  %s1 = inlined_call_operand.hbm [shape: f32[16,64], index: 1, kind: input, shape index: {}]
  %s2 = inlined_call_operand.vmem [shape: f32[16,64], index: 2, kind: input, shape index: {}]
  %s3 = inlined_call_operand.hbm [shape: f32[8,64], index: 3, kind: output, shape index: {}]
  %s4 = sld [smem:[#allocation0]]
  $region26: #{tpu_custom_call.1} parent=0
    _
  %s6 = ssub.s32 1, %s4
  %s7 = scalar_select 0, %s6, %s4
  $region1: #{tpu_custom_call.1} parent=0
    #allocation2 [shape = 'u8[8192]{0}', space=vmem, size = 0x2000, scoped, tag = 'input window, operand 1, single buffered']
    #allocation3 [shape = 's32[1]{0}', space=sflag, size = 0x4, scoped, tag = 'scoped memory for tpu_custom_call.1']
    #allocation4 [shape = 's32[1]{0}', space=sflag, size = 0x4, scoped, tag = 'scoped memory for tpu_custom_call.1']
    #allocation5 [shape = 'u8[4096]{0}', space=vmem, size = 0x1000, scoped, tag = 'output window, operand 0, single buffered']
    %8 = vsyncpa [#allocation3], 0
    %9 = vsyncpa [#allocation4], 0
    // Predicated region
    $region2: #{tpu_custom_call.1} parent=1 // pred_check
      _
    $region3: #{tpu_custom_call.1} parent=1 // pred_check_branch
      %11 = sbr.rel (0) target = $region5
    $region4: #{tpu_custom_call.1} parent=1 // pred_region
      _
    $region5: #{tpu_custom_call.1} parent=1 // pred_fallthru
      _
    // Predicated region
    $region6: #{tpu_custom_call.1} parent=1 // pred_check
      _
    $region7: #{tpu_custom_call.1} parent=1 // pred_check_branch
      %13 = sbr.rel (0) target = $region9
    $region8: #{tpu_custom_call.1} parent=1 // pred_region
      %s15 = ssub.s32 256, 256
      %16 = vsyncadd [#allocation3], %s15
      %s17 = sshll.u32 [#allocation2], 4
      %s18 = int_to_ptr.vmem [resolvable:$true] %s17
      %23 = dma.hbm_to_vmem [thread:$0]  %s1, 256, %s18, [#allocation3], 128, 128, 8
    $region9: #{tpu_custom_call.1} parent=1 // pred_fallthru
      _
    // Predicated region
    $region10: #{tpu_custom_call.1} parent=1 // pred_check
      _
    $region11: #{tpu_custom_call.1} parent=1 // pred_check_branch
      %25 = sbr.rel (0) target = $region13
    $region12: #{tpu_custom_call.1} parent=1 // pred_region
      _
    $region13: #{tpu_custom_call.1} parent=1 // pred_fallthru
      _
    // Predicated region
    $region14: #{tpu_custom_call.1} parent=1 // pred_check
      _
    $region15: #{tpu_custom_call.1} parent=1 // pred_check_branch
      %27 = sbr.rel (0) target = $region17
    $region16: #{tpu_custom_call.1} parent=1 // pred_region
      %28 = dma.done [#allocation3], 256
    $region17: #{tpu_custom_call.1} parent=1 // pred_fallthru
      _
    %v29 = vld [vmem:[%s0] sm:$0xff]
    %v30 = vlaneseq
    %v31 = vand.u32 %v30, 127
    %32 = vset.pattern.permute.xlu0 0
    %33 = vperm.xlu0 %32, %v29
    %v34 = vpop.permute.xlu0 %33
    %vm35 = vcmp.eq.s32.totalorder %v31, %v34
    %v36 = vsel %vm35, 1, 0
    %v37 = vcvt.s32.f32 %v36
    %v38 = vld [vmem:[#allocation2] sm:$0xff]
    %v39 = vld [vmem:[#allocation2 + $0x8] sm:$0xff]
    %v40 = vld [vmem:[%s2] sm:$0xff]
    %vm41 = vcmask 130048
    %v43 = vsel %vm41, %v37, 0
    %45 = vmatprep.subr.mxu0 0.0
    %46 = vmatpush1.msra.mxu0 %v38
    %47 = vmatprep.subr.mxu0 0.0
    %48 = vmatpush1.msra.mxu0 %v39
    %49 = vmatprep.subr.mxu0 0.0
    %50 = vmatpush1.msra.mxu0 0.0
    %51 = vmatprep.subr.mxu0 0.0
    %52 = vmatpush1.msra.mxu0 0.0
    %53 = vmatprep.subr.mxu0 0.0
    %54 = vmatpush1.msra.mxu0 0.0
    %55 = vmatprep.subr.mxu0 0.0
    %56 = vmatpush1.msra.mxu0 0.0
    %57 = vmatprep.subr.mxu0 0.0
    %58 = vmatpush1.msra.mxu0 0.0
    %59 = vmatprep.subr.mxu0 0.0
    %60 = vmatpush1.msra.mxu0 0.0
    %61 = vmatprep.subr.mxu0 0.0
    %62 = vmatpush1.msra.mxu0 0.0
    %63 = vmatprep.subr.mxu0 0.0
    %64 = vmatpush1.msra.mxu0 0.0
    %65 = vmatprep.subr.mxu0 0.0
    %66 = vmatpush1.msra.mxu0 0.0
    %67 = vmatprep.subr.mxu0 0.0
    %68 = vmatpush1.msra.mxu0 0.0
    %69 = vmatprep.subr.mxu0 0.0
    %70 = vmatpush1.msra.mxu0 0.0
    %71 = vmatprep.subr.mxu0 0.0
    %72 = vmatpush1.msra.mxu0 0.0
    %73 = vmatprep.subr.mxu0 0.0
    %74 = vmatpush1.msra.mxu0 0.0
    %75 = vmatprep.subr.mxu0 0.0
    %76 = vmatpush1.msra.mxu0 0.0
    %77 = vmatprep.subr.mxu0 0.0
    %78 = vmatpush1.msra.mxu0 0.0
    %79 = vmatprep.subr.mxu0 0.0
    %80 = vmatpush1.msra.mxu0 0.0
    %81 = vmatprep.subr.mxu0 0.0
    %82 = vmatpush1.msra.mxu0 0.0
    %83 = vmatprep.subr.mxu0 0.0
    %84 = vmatpush1.msra.mxu0 0.0
    %85 = vmatprep.subr.mxu0 0.0
    %86 = vmatpush1.msra.mxu0 0.0
    %87 = vmatprep.subr.mxu0 0.0
    %88 = vmatpush1.msra.mxu0 0.0
    %89 = vmatprep.subr.mxu0 0.0
    %90 = vmatpush1.msra.mxu0 0.0
    %91 = vmatprep.subr.mxu0 0.0
    %92 = vmatpush1.msra.mxu0 0.0
    %93 = vmatprep.subr.mxu0 0.0
    %94 = vmatpush1.msra.mxu0 0.0
    %95 = vmatprep.subr.mxu0 0.0
    %96 = vmatpush1.msra.mxu0 0.0
    %97 = vmatprep.subr.mxu0 0.0
    %98 = vmatpush1.msra.mxu0 0.0
    %99 = vmatprep.subr.mxu0 0.0
    %100 = vmatpush1.msra.mxu0 0.0
    %101 = vmatprep.subr.mxu0 0.0
    %102 = vmatpush1.msra.mxu0 0.0
    %103 = vmatprep.subr.mxu0 0.0
    %104 = vmatpush1.msra.mxu0 0.0
    %105 = vmatprep.subr.mxu0 0.0
    %106 = vmatpush1.msra.mxu0 0.0
    %107 = vmatprep.subr.mxu0 0.0
    %108 = vmatpush1.msra.mxu0 0.0
    %109 = vmatprep.mubr.f32.mxu0 0.0
    %110 = vmatmul.mubr.f32.gmra.mrb[0].mxu0 %v43
    %v111 = vpop.f32.mrb[0].mxu0
    %v112 = vadd.f32 %v40, %v111
    %v113 = vpop.f32.mrb[0].mxu0
    %114 = vdwg.mxu0
    %vm115 = vcmask 523264
    %116 = vst.msk [vmem:[#allocation5] sm:$0xff] %vm115, %v112
    // Predicated region
    $region18: #{tpu_custom_call.1} parent=1 // pred_check
      _
    $region19: #{tpu_custom_call.1} parent=1 // pred_check_branch
      %118 = sbr.rel (0) target = $region21
    $region20: #{tpu_custom_call.1} parent=1 // pred_region
      %s120 = ssub.s32 128, 128
      %121 = vsyncadd [#allocation4], %s120
      %s123 = sshll.u32 [#allocation5], 4
      %s124 = int_to_ptr.vmem [resolvable:$true] %s123
      %126 = dma.vmem_to_hbm [thread:$0]  %s124, 128, %s3, [#allocation4]
    $region21: #{tpu_custom_call.1} parent=1 // pred_fallthru
      _
    // Predicated region
    $region22: #{tpu_custom_call.1} parent=1 // pred_check
      _
    $region23: #{tpu_custom_call.1} parent=1 // pred_check_branch
      %128 = sbr.rel (0) target = $region25
    $region24: #{tpu_custom_call.1} parent=1 // pred_region
      %129 = dma.done [#allocation4], 128
    $region25: #{tpu_custom_call.1} parent=1 // pred_fallthru
      _
    %130 = vsyncpa [#allocation3], 1
    %131 = vsyncpa [#allocation4], 1

</llo_original>
